<compile_context>
chip_gen: v6e
topology: v6e:2x2x1
jax: 0.10.0
libtpu: 0.0.40
codegen_flags: <defaults>
</compile_context>

<pallas_src>
import math
import numpy as np

import jax
import jax.numpy as jnp
from jax.experimental import pallas as pl
from jax.experimental.pallas import tpu as pltpu


# -------------------- config (VPTEncoderConfig equivalent) --------------------
VISUAL_HIDDEN = 32     # config.visual_hidden_size (C)
NUM_PATCHES = 16       # config.num_patches (N), div = sqrt(N) = 4
USE_MASK_TOKEN = True  # config.use_mask_token
# config.use_projector = False.
# TODO(synk): use_projector / strategy='embedding' (Conv2d patch_embedding)
#             branches are not exercised by this config and are not implemented.


def _cdiv(a, b):
    return -(-a // b)


def _num_tensorcores():
    """2 on chips exposing two TensorCores to one program (v7x); else 1."""
    try:
        kind = jax.devices()[0].device_kind.lower()
    except Exception:
        return 1
    return 2 if "v7" in kind else 1


# ------------------------------ Pallas kernel --------------------------------
def make_vpt_kernel(Bt, Q, L, N, C):
    """Per-grid-step kernel processing Bt batch elements at once."""

    def kernel(x_ref, m_ref, sel_ref, mew_ref, meb_ref, posp_ref, post_ref,
               vpt_ref, tok_ref):
        # x_ref   : [Bt, L, C]    f32  image features
        # m_ref   : [Bt, Q, L]    bf16 padded raw region masks (flattened HW)
        # sel_ref : [L, N*C]      bf16 constant 0/1 patch-column selector
        # mew_ref : [1, C]        f32  mask_embedding.weight.T  (Linear(1, C))
        # meb_ref : [1, C]        f32  mask_embedding.bias
        # posp_ref: [1, N*C]      f32  position_embedding rows 0..N-1, flattened
        # post_ref: [1, C]        f32  position_embedding row N (mask token)
        # vpt_ref : [Bt, Q, N*C]  f32  lane-dense pooled patch features (+pos)
        # tok_ref : [Bt, Q, C]    f32  mask token (+pos)
        m = m_ref[...]                                            # [Bt, Q, L]

        # masks = (masks > 0); masks = masks / (sum + 1e-8)
        binm = (m > 0).astype(jnp.float32)
        denorm = jnp.sum(binm, axis=-1, keepdims=True) + 1e-8     # [Bt, Q, 1]
        inv = pl.reciprocal(denorm, approx=True)                  # EUP slot
        mnorm = (binm * inv).astype(jnp.bfloat16)                 # [Bt, Q, L]

        # einsum('bcnhw,bqnhw->bqnc') of the pooling strategy, as one batched
        # MXU matmul with the patch selector folded onto the x operand so the
        # result comes out lane-dense as [Q, N*C].
        x = x_ref[...].astype(jnp.bfloat16)                       # [Bt, L, C]
        xsel = jnp.concatenate([x] * N, axis=-1) * sel_ref[...][None]  # [Bt,L,N*C]
        vpt = jnp.einsum("bql,blk->bqk", mnorm, xsel,
                         preferred_element_type=jnp.float32)      # [Bt, Q, N*C]
        vpt_ref[...] = (vpt + posp_ref[...][None]).astype(vpt_ref.dtype)

        # mask token: AdaptiveAvgPool2d((1,1)) of Linear(1,C)(mask)
        #           = mean(mask_norm) * W + b ; mean reuses denorm since
        #             sum(mnorm) = sum(binm)/denorm = (denorm - 1e-8)*inv.
        mean = (denorm - 1e-8) * (inv * (1.0 / L))                # [Bt, Q, 1]
        tok = mean * mew_ref[...][None] + meb_ref[...][None] + post_ref[...][None]
        tok_ref[...] = tok.astype(tok_ref.dtype)

    return kernel


# ------------------------------- wrapper / glue -------------------------------
def pad_regions(regions):
    """Plain-python equivalent of VPTEncoder.pad_regions (ragged -> dense)."""
    region_count = [0 if r is None else len(r) for r in regions]
    max_num = max(region_count)
    max_h = max((rr.shape[0] for r in regions if r for rr in r), default=0)
    max_w = max((rr.shape[1] for r in regions if r for rr in r), default=0)
    B = len(regions)
    dense = np.zeros((B, max_num, max_h, max_w), dtype=np.float32)
    for b, r in enumerate(regions):
        if not r:
            continue
        for qi, region in enumerate(r):
            dense[b, qi, : region.shape[0], : region.shape[1]] = np.asarray(region)
    return dense, region_count


def vpt_encoder_forward(x, regions, params, return_dict=True, max_bt=64):
    """x: [B, L, C] jnp array, regions: list (len B) of lists of [h, w] masks."""
    B, L, C = x.shape
    H = W = int(math.sqrt(L))
    N = NUM_PATCHES
    P = L // N

    masks_np, vpt_count = pad_regions(regions)
    masks = jnp.asarray(masks_np)
    Q = masks.shape[1]
    if masks.shape[-2:] != (H, W):
        # F.interpolate(..., mode='bilinear', align_corners=False) equivalent (glue).
        masks = jax.image.resize(masks, (B, Q, H, W), method="bilinear")
    # The kernel only needs the sign of the mask; bf16 preserves `>0` exactly
    # and halves the HBM/DMA bytes of the dominant [B, Q, L] input stream.
    masks_flat = masks.reshape(B, Q, H * W).astype(jnp.bfloat16)

    # ---- batch blocking:
    #   * single grid step on single-TC chips (v5e/v6e) whenever it fits,
    #   * step count rounded to a multiple of 2 on 2-TC chips (v7x) so both
    #     TensorCores get equal work under the "parallel" grid axis.
    ntc = _num_tensorcores()
    num_steps = max(1, _cdiv(B, max_bt))
    if ntc > 1 and B > 1:
        num_steps = _cdiv(max(num_steps, ntc), ntc) * ntc
    Bt = _cdiv(B, num_steps)
    B_pad = num_steps * Bt

    xk = x  # f32 straight in; cast to bf16 inside the kernel (no extra HBM pass)
    if B_pad != B:
        xk = jnp.pad(xk, ((0, B_pad - B), (0, 0), (0, 0)))
        masks_flat = jnp.pad(masks_flat, ((0, B_pad - B), (0, 0), (0, 0)))

    # constant [L, N*C] selector: column block [n*C, (n+1)*C) is active iff flat
    # position l lies in patch n's contiguous length-P run (matches the plain
    # reshape(b, c, N, h//div, w//div) patch decomposition of the reference).
    sel_np = np.zeros((L, N * C), dtype=np.float32)
    for n in range(N):
        sel_np[n * P:(n + 1) * P, n * C:(n + 1) * C] = 1.0
    sel = jnp.asarray(sel_np, dtype=jnp.bfloat16)

    pos = params["pos"]                       # [N+1, C]
    posp = pos[:N].reshape(1, N * C)          # [1, N*C] lane-dense patch pos
    post = pos[N:N + 1]                       # [1, C]   mask-token pos

    kernel = make_vpt_kernel(Bt, Q, L, N, C)
    # NOTE(v7x): if Bt / Q / L are ever scaled to production sizes, re-budget the
    # in-kernel intermediates (xsel [Bt,L,N*C] + double-buffered inputs/outputs)
    # against 64 MiB physical VMEM and set vmem_limit_bytes explicitly.
    vpt_flat, token = pl.pallas_call(
        kernel,
        out_shape=(jax.ShapeDtypeStruct((B_pad, Q, N * C), jnp.float32),
                   jax.ShapeDtypeStruct((B_pad, Q, C), jnp.float32)),
        grid=(num_steps,),
        in_specs=[
            pl.BlockSpec((Bt, L, C), lambda b: (b, 0, 0)),        # x (f32)
            pl.BlockSpec((Bt, Q, L), lambda b: (b, 0, 0)),        # masks (bf16)
            pl.BlockSpec((L, N * C), lambda b: (0, 0)),           # selector (const)
            pl.BlockSpec((1, C), lambda b: (0, 0)),               # mask_emb W^T
            pl.BlockSpec((1, C), lambda b: (0, 0)),               # mask_emb bias
            pl.BlockSpec((1, N * C), lambda b: (0, 0)),           # pos (patches)
            pl.BlockSpec((1, C), lambda b: (0, 0)),               # pos (token)
        ],
        out_specs=(pl.BlockSpec((Bt, Q, N * C), lambda b: (b, 0, 0)),
                   pl.BlockSpec((Bt, Q, C), lambda b: (b, 0, 0))),
        compiler_params=pltpu.CompilerParams(dimension_semantics=("parallel",)),
    )(xk, masks_flat, sel, params["me_w_t"], params["me_b"], posp, post)

    vpt_flat = vpt_flat[:B]
    token = token[:B]
    feats = jnp.concatenate(
        [vpt_flat.reshape(B, Q, N, C), token[:, :, None, :]], axis=2)  # [B,Q,N+1,C]

    if return_dict:
        return dict(vpt_feats=feats, vpt_count=vpt_count)
    return feats, vpt_count


# ------------------------------ reference (numpy) ------------------------------
def reference_forward(x, masks_dense, pos, me_w, me_b):
    x = np.asarray(x)
    B, L, C = x.shape
    H = W = int(math.sqrt(L))
    N = NUM_PATCHES
    div = int(math.sqrt(N))
    Q = masks_dense.shape[1]

    binm = (masks_dense > 0).astype(np.float32)
    denorm = binm.sum(axis=(-1, -2), keepdims=True) + 1e-8
    mn = binm / denorm

    xr = x.reshape(B, H, W, C).transpose(0, 3, 1, 2)                    # [B,C,H,W]
    xp = xr.reshape(B, C, N, H // div, W // div)
    mp = mn.reshape(B, Q, N, H // div, W // div)
    vpt = np.einsum("bcnhw,bqnhw->bqnc", xp, mp)

    mean = mn.mean(axis=(-1, -2))                                       # [B,Q]
    token = mean[..., None] * me_w[:, 0][None, None, :] + me_b[None, None, :]
    feats = np.concatenate([vpt, token[:, :, None, :]], axis=2)         # [B,Q,N+1,C]
    feats = feats + np.asarray(pos)[None, None]
    return feats


# ------------------------------------ main ------------------------------------
if __name__ == "__main__":
    key = jax.random.PRNGKey(0)
    kx, kpos, kmw, kmb, km = jax.random.split(key, 5)

    B, C, N = 4, VISUAL_HIDDEN, NUM_PATCHES
    H = W = 8
    L = H * W

    # deterministic parameter init (shapes from the module's __init__)
    pos = jax.random.normal(kpos, (N + 1, C), jnp.float32) * 0.02         # Embedding(N+1, C)
    me_w = jax.random.normal(kmw, (C, 1), jnp.float32) * 0.5              # Linear(1, C).weight
    me_b = jax.random.normal(kmb, (C,), jnp.float32) * 0.01               # Linear(1, C).bias
    params = {
        "pos": pos,                                 # [N+1, C]
        "me_w_t": jnp.transpose(me_w),              # [1, C]
        "me_b": me_b.reshape(1, C),                 # [1, C]
    }

    # inputs
    x = jax.random.normal(kx, (B, L, C), jnp.float32)
    mask_bits = np.asarray(
        jax.random.bernoulli(km, 0.5, (B, 3, H, W))
    ).astype(np.float32)
    # ragged region lists: counts 2 / 3 / 1 / 3 across the batch
    regions = [
        [mask_bits[0, 0], mask_bits[0, 1]],
        [mask_bits[1, 0], mask_bits[1, 1], mask_bits[1, 2]],
        [mask_bits[2, 0]],
        [mask_bits[3, 0], mask_bits[3, 1], mask_bits[3, 2]],
    ]

    result = vpt_encoder_forward(x, regions, params)
    vpt_feats = jax.block_until_ready(result["vpt_feats"])

    # validate against a plain-numpy reference of the PyTorch math
    masks_dense, _ = pad_regions(regions)
    ref = reference_forward(x, masks_dense, pos, np.asarray(me_w), np.asarray(me_b))
    assert vpt_feats.shape == (B, 3, N + 1, C)
    # tolerance accounts for bf16 MXU operands (f32 accumulation) + approx recip
    np.testing.assert_allclose(np.asarray(vpt_feats), ref, rtol=1e-2, atol=5e-3)
    assert result["vpt_count"] == [2, 3, 1, 3]

    print("KERNEL_OK")
</pallas_src>

<mosaic_0001>
module attributes {stable_mosaic.version = 11 : i64} {
  func.func @kernel(%arg0: i32, %arg1: memref<4x64x32xf32, #tpu.memory_space<vmem>>, %arg2: memref<4x3x64xbf16, #tpu.memory_space<vmem>>, %arg3: memref<64x512xbf16, #tpu.memory_space<vmem>>, %arg4: memref<1x32xf32, #tpu.memory_space<vmem>>, %arg5: memref<1x32xf32, #tpu.memory_space<vmem>>, %arg6: memref<1x512xf32, #tpu.memory_space<vmem>>, %arg7: memref<1x32xf32, #tpu.memory_space<vmem>>, %arg8: memref<4x3x512xf32, #tpu.memory_space<vmem>>, %arg9: memref<4x3x32xf32, #tpu.memory_space<vmem>>) attributes {dimension_semantics = [#tpu.dimension_semantics<parallel>], iteration_bounds = array<i64: 1>, scalar_prefetch = 0 : i64, scratch_operands = 0 : i64, tpu.core_type = #tpu.core_type<tc>, window_params = [{transform_indices = @transform_0, window_bounds = array<i64: 4, 64, 32>}, {transform_indices = @transform_1, window_bounds = array<i64: 4, 3, 64>}, {pipeline_mode = #tpu.pipeline_mode<synchronous>, transform_indices = @transform_2, window_bounds = array<i64: 64, 512>}, {pipeline_mode = #tpu.pipeline_mode<synchronous>, transform_indices = @transform_3, window_bounds = array<i64: 1, 32>}, {pipeline_mode = #tpu.pipeline_mode<synchronous>, transform_indices = @transform_4, window_bounds = array<i64: 1, 32>}, {pipeline_mode = #tpu.pipeline_mode<synchronous>, transform_indices = @transform_5, window_bounds = array<i64: 1, 512>}, {pipeline_mode = #tpu.pipeline_mode<synchronous>, transform_indices = @transform_6, window_bounds = array<i64: 1, 32>}, {transform_indices = @transform_7, window_bounds = array<i64: 4, 3, 512>}, {transform_indices = @transform_8, window_bounds = array<i64: 4, 3, 32>}]} {
    %c0 = arith.constant 0 : index
    %c0_0 = arith.constant 0 : index
    %c0_1 = arith.constant 0 : index
    %0 = vector.load %arg2[%c0, %c0_0, %c0_1] : memref<4x3x64xbf16, #tpu.memory_space<vmem>>, vector<4x3x64xbf16>
    %cst = arith.constant 0.000000e+00 : bf16
    %1 = vector.broadcast %cst : bf16 to vector<4x3x64xbf16>
    %2 = arith.cmpf ogt, %0, %1 : vector<4x3x64xbf16>
    %3 = arith.extui %2 : vector<4x3x64xi1> to vector<4x3x64xi32>
    %4 = arith.sitofp %3 : vector<4x3x64xi32> to vector<4x3x64xf32>
    %cst_2 = arith.constant dense<0.000000e+00> : vector<4x3xf32>
    %5 = vector.multi_reduction <add>, %4, %cst_2 [2] : vector<4x3x64xf32> to vector<4x3xf32>
    %6 = vector.shape_cast %5 : vector<4x3xf32> to vector<4x3x1xf32>
    %cst_3 = arith.constant 9.99999993E-9 : f32
    %7 = vector.broadcast %cst_3 : f32 to vector<4x3x1xf32>
    %8 = arith.addf %6, %7 : vector<4x3x1xf32>
    %9 = tpu.reciprocal %8 {approx = true} : vector<4x3x1xf32> -> vector<4x3x1xf32>
    %10 = vector.broadcast %9 : vector<4x3x1xf32> to vector<4x3x64xf32>
    %11 = arith.mulf %4, %10 : vector<4x3x64xf32>
    %12 = arith.truncf %11 : vector<4x3x64xf32> to vector<4x3x64xbf16>
    %c0_4 = arith.constant 0 : index
    %c0_5 = arith.constant 0 : index
    %c0_6 = arith.constant 0 : index
    %13 = vector.load %arg1[%c0_4, %c0_5, %c0_6] : memref<4x64x32xf32, #tpu.memory_space<vmem>>, vector<4x64x32xf32>
    %14 = arith.truncf %13 : vector<4x64x32xf32> to vector<4x64x32xbf16>
    %15 = tpu.concatenate %14, %14, %14, %14, %14, %14, %14, %14, %14, %14, %14, %14, %14, %14, %14, %14 in 2 : vector<4x64x32xbf16>, vector<4x64x32xbf16>, vector<4x64x32xbf16>, vector<4x64x32xbf16>, vector<4x64x32xbf16>, vector<4x64x32xbf16>, vector<4x64x32xbf16>, vector<4x64x32xbf16>, vector<4x64x32xbf16>, vector<4x64x32xbf16>, vector<4x64x32xbf16>, vector<4x64x32xbf16>, vector<4x64x32xbf16>, vector<4x64x32xbf16>, vector<4x64x32xbf16>, vector<4x64x32xbf16> -> vector<4x64x512xbf16>
    %c0_7 = arith.constant 0 : index
    %c0_8 = arith.constant 0 : index
    %16 = vector.load %arg3[%c0_7, %c0_8] : memref<64x512xbf16, #tpu.memory_space<vmem>>, vector<64x512xbf16>
    %17 = vector.shape_cast %16 : vector<64x512xbf16> to vector<1x64x512xbf16>
    %18 = vector.broadcast %17 : vector<1x64x512xbf16> to vector<4x64x512xbf16>
    %19 = arith.mulf %15, %18 : vector<4x64x512xbf16>
    "tpu.trace_start"() <{level = 10 : i32, message = "bql,blk->bqk"}> : () -> ()
    %cst_9 = arith.constant dense<0.000000e+00> : vector<4x3x512xf32>
    %20 = tpu.matmul %12, %19, %cst_9 {dimension_numbers = #tpu.dot_dimension_numbers<[2], [1], [1], [2], [0, 0, 0, 1, 1, 2], [0], [0]>} : vector<4x3x64xbf16>, vector<4x64x512xbf16>, vector<4x3x512xf32> -> vector<4x3x512xf32>
    "tpu.trace_stop"() : () -> ()
    %c0_10 = arith.constant 0 : index
    %c0_11 = arith.constant 0 : index
    %21 = vector.load %arg6[%c0_10, %c0_11] : memref<1x512xf32, #tpu.memory_space<vmem>>, vector<1x512xf32>
    %22 = vector.shape_cast %21 : vector<1x512xf32> to vector<1x1x512xf32>
    %23 = vector.broadcast %22 : vector<1x1x512xf32> to vector<4x3x512xf32>
    %24 = arith.addf %20, %23 : vector<4x3x512xf32>
    %c0_12 = arith.constant 0 : index
    %c0_13 = arith.constant 0 : index
    %c0_14 = arith.constant 0 : index
    %25 = vector.load %arg8[%c0_12, %c0_13, %c0_14] : memref<4x3x512xf32, #tpu.memory_space<vmem>>, vector<4x3x512xf32>
    tpu.vector_store %arg8[%c0_12, %c0_13, %c0_14], %24 {strides = array<i32>} : memref<4x3x512xf32, #tpu.memory_space<vmem>>, vector<4x3x512xf32>,
    %cst_15 = arith.constant 9.99999993E-9 : f32
    %26 = vector.broadcast %cst_15 : f32 to vector<4x3x1xf32>
    %27 = arith.subf %8, %26 : vector<4x3x1xf32>
    %cst_16 = arith.constant 1.562500e-02 : f32
    %28 = vector.broadcast %cst_16 : f32 to vector<4x3x1xf32>
    %29 = arith.mulf %9, %28 : vector<4x3x1xf32>
    %30 = arith.mulf %27, %29 : vector<4x3x1xf32>
    %c0_17 = arith.constant 0 : index
    %c0_18 = arith.constant 0 : index
    %31 = vector.load %arg4[%c0_17, %c0_18] : memref<1x32xf32, #tpu.memory_space<vmem>>, vector<1x32xf32>
    %32 = vector.shape_cast %31 : vector<1x32xf32> to vector<1x1x32xf32>
    %33 = vector.broadcast %30 : vector<4x3x1xf32> to vector<4x3x32xf32>
    %34 = vector.broadcast %32 : vector<1x1x32xf32> to vector<4x3x32xf32>
    %35 = arith.mulf %33, %34 : vector<4x3x32xf32>
    %c0_19 = arith.constant 0 : index
    %c0_20 = arith.constant 0 : index
    %36 = vector.load %arg5[%c0_19, %c0_20] : memref<1x32xf32, #tpu.memory_space<vmem>>, vector<1x32xf32>
    %37 = vector.shape_cast %36 : vector<1x32xf32> to vector<1x1x32xf32>
    %38 = vector.broadcast %37 : vector<1x1x32xf32> to vector<4x3x32xf32>
    %39 = arith.addf %35, %38 : vector<4x3x32xf32>
    %c0_21 = arith.constant 0 : index
    %c0_22 = arith.constant 0 : index
    %40 = vector.load %arg7[%c0_21, %c0_22] : memref<1x32xf32, #tpu.memory_space<vmem>>, vector<1x32xf32>
    %41 = vector.shape_cast %40 : vector<1x32xf32> to vector<1x1x32xf32>
    %42 = vector.broadcast %41 : vector<1x1x32xf32> to vector<4x3x32xf32>
    %43 = arith.addf %39, %42 : vector<4x3x32xf32>
    %c0_23 = arith.constant 0 : index
    %c0_24 = arith.constant 0 : index
    %c0_25 = arith.constant 0 : index
    %44 = vector.load %arg9[%c0_23, %c0_24, %c0_25] : memref<4x3x32xf32, #tpu.memory_space<vmem>>, vector<4x3x32xf32>
    tpu.vector_store %arg9[%c0_23, %c0_24, %c0_25], %43 {strides = array<i32>} : memref<4x3x32xf32, #tpu.memory_space<vmem>>, vector<4x3x32xf32>,
    return
  }
  func.func @transform_0(%arg0: i32) -> (i32, i32, i32) {
    %c0_i32 = arith.constant 0 : i32
    %c0_i32_0 = arith.constant 0 : i32
    %c0_i32_1 = arith.constant 0 : i32
    return %arg0, %c0_i32, %c0_i32_0 : i32, i32, i32
  }
  func.func @transform_1(%arg0: i32) -> (i32, i32, i32) {
    %c0_i32 = arith.constant 0 : i32
    %c0_i32_0 = arith.constant 0 : i32
    %c0_i32_1 = arith.constant 0 : i32
    return %arg0, %c0_i32, %c0_i32_0 : i32, i32, i32
  }
  func.func @transform_2(%arg0: i32) -> (i32, i32) {
    %c0_i32 = arith.constant 0 : i32
    %c0_i32_0 = arith.constant 0 : i32
    %c0_i32_1 = arith.constant 0 : i32
    return %c0_i32, %c0_i32_0 : i32, i32
  }
  func.func @transform_3(%arg0: i32) -> (i32, i32) {
    %c0_i32 = arith.constant 0 : i32
    %c0_i32_0 = arith.constant 0 : i32
    %c0_i32_1 = arith.constant 0 : i32
    return %c0_i32, %c0_i32_0 : i32, i32
  }
  func.func @transform_4(%arg0: i32) -> (i32, i32) {
    %c0_i32 = arith.constant 0 : i32
    %c0_i32_0 = arith.constant 0 : i32
    %c0_i32_1 = arith.constant 0 : i32
    return %c0_i32, %c0_i32_0 : i32, i32
  }
  func.func @transform_5(%arg0: i32) -> (i32, i32) {
    %c0_i32 = arith.constant 0 : i32
    %c0_i32_0 = arith.constant 0 : i32
    %c0_i32_1 = arith.constant 0 : i32
    return %c0_i32, %c0_i32_0 : i32, i32
  }
  func.func @transform_6(%arg0: i32) -> (i32, i32) {
    %c0_i32 = arith.constant 0 : i32
    %c0_i32_0 = arith.constant 0 : i32
    %c0_i32_1 = arith.constant 0 : i32
    return %c0_i32, %c0_i32_0 : i32, i32
  }
  func.func @transform_7(%arg0: i32) -> (i32, i32, i32) {
    %c0_i32 = arith.constant 0 : i32
    %c0_i32_0 = arith.constant 0 : i32
    %c0_i32_1 = arith.constant 0 : i32
    return %arg0, %c0_i32, %c0_i32_0 : i32, i32, i32
  }
  func.func @transform_8(%arg0: i32) -> (i32, i32, i32) {
    %c0_i32 = arith.constant 0 : i32
    %c0_i32_0 = arith.constant 0 : i32
    %c0_i32_1 = arith.constant 0 : i32
    return %arg0, %c0_i32, %c0_i32_0 : i32, i32, i32
  }
}

</mosaic_0001>

<llo_original>
// kernel: tpu_custom_call.1
$region0: #{tpu_custom_call.1}
  #allocation0 [shape = 'u32[]', space=smem, size = 0x4, offset = 0x4, fixed_abs, tag = 'smem constant byte address 0x4 - core index']
  #allocation1 [shape = 'u32[144,128]{1,0:T(1,128)}', space=vmem, size = 0x12000, scoped, tag = 'internal scratch']
  %s0 = inlined_call_operand.vmem [shape: f32[4,64,32], index: 0, kind: input, shape index: {}]
  %s1 = inlined_call_operand.vmem [shape: bf16[4,3,64], index: 1, kind: input, shape index: {}]
  %s2 = inlined_call_operand.vmem [shape: bf16[64,512], index: 2, kind: input, shape index: {}]
  %s3 = inlined_call_operand.vmem [shape: f32[1,32], index: 3, kind: input, shape index: {}]
  %s4 = inlined_call_operand.vmem [shape: f32[1,32], index: 4, kind: input, shape index: {}]
  %s5 = inlined_call_operand.vmem [shape: f32[1,512], index: 5, kind: input, shape index: {}]
  %s6 = inlined_call_operand.vmem [shape: f32[1,32], index: 6, kind: input, shape index: {}]
  %s7 = inlined_call_operand.vmem [shape: f32[4,3,512], index: 7, kind: output, shape index: {0}]
  %s8 = inlined_call_operand.vmem [shape: f32[4,3,32], index: 8, kind: output, shape index: {1}]
  %9 = xla_tuple %s7, %s8
  %s10 = sld [smem:[#allocation0]]
  $region46: #{tpu_custom_call.1} parent=0
    _
  %s12 = ssub.s32 1, %s10
  %s13 = scalar_select 0, %s12, %s10
  // Predicated region
  $region2: #{tpu_custom_call.1} parent=0 // pred_check
    _
  $region3: #{tpu_custom_call.1} parent=0 // pred_check_branch
    %15 = sbr.rel (0) target = $region5
  $region4: #{tpu_custom_call.1} parent=0 // pred_region
    _
  $region5: #{tpu_custom_call.1} parent=0 // pred_fallthru
    _
  // Predicated region
  $region6: #{tpu_custom_call.1} parent=0 // pred_check
    _
  $region7: #{tpu_custom_call.1} parent=0 // pred_check_branch
    %17 = sbr.rel (0) target = $region9
  $region8: #{tpu_custom_call.1} parent=0 // pred_region
    _
  $region9: #{tpu_custom_call.1} parent=0 // pred_fallthru
    _
  // Predicated region
  $region10: #{tpu_custom_call.1} parent=0 // pred_check
    _
  $region11: #{tpu_custom_call.1} parent=0 // pred_check_branch
    %19 = sbr.rel (0) target = $region13
  $region12: #{tpu_custom_call.1} parent=0 // pred_region
    _
  $region13: #{tpu_custom_call.1} parent=0 // pred_fallthru
    _
  // Predicated region
  $region14: #{tpu_custom_call.1} parent=0 // pred_check
    _
  $region15: #{tpu_custom_call.1} parent=0 // pred_check_branch
    %21 = sbr.rel (0) target = $region17
  $region16: #{tpu_custom_call.1} parent=0 // pred_region
    _
  $region17: #{tpu_custom_call.1} parent=0 // pred_fallthru
    _
  // Predicated region
  $region18: #{tpu_custom_call.1} parent=0 // pred_check
    _
  $region19: #{tpu_custom_call.1} parent=0 // pred_check_branch
    %23 = sbr.rel (0) target = $region21
  $region20: #{tpu_custom_call.1} parent=0 // pred_region
    _
  $region21: #{tpu_custom_call.1} parent=0 // pred_fallthru
    _
  // Predicated region
  $region22: #{tpu_custom_call.1} parent=0 // pred_check
    _
  $region23: #{tpu_custom_call.1} parent=0 // pred_check_branch
    %25 = sbr.rel (0) target = $region25
  $region24: #{tpu_custom_call.1} parent=0 // pred_region
    _
  $region25: #{tpu_custom_call.1} parent=0 // pred_fallthru
    _
  // Predicated region
  $region26: #{tpu_custom_call.1} parent=0 // pred_check
    _
  $region27: #{tpu_custom_call.1} parent=0 // pred_check_branch
    %27 = sbr.rel (0) target = $region29
  $region28: #{tpu_custom_call.1} parent=0 // pred_region
    _
  $region29: #{tpu_custom_call.1} parent=0 // pred_fallthru
    _
  %v31 = vld [vmem:[%s1] sm:$0x3]
  %v32 = vld [vmem:[%s1 + $0x2] sm:$0x3]
  %v33 = vld [vmem:[%s1 + $0x4] sm:$0x3]
  %v34 = vld [vmem:[%s1 + $0x6] sm:$0x3]
  %vm35 = vcmp.gt.bf16.partialorder %v31, 0
  %vm36 = vcmp.gt.bf16.partialorder %v32, 0
  %vm37 = vcmp.gt.bf16.partialorder %v33, 0
  %vm38 = vcmp.gt.bf16.partialorder %v34, 0
  %v39 = vsel %vm35, 65537, 0
  %v40 = vsel %vm36, 65537, 0
  %v41 = vsel %vm37, 65537, 0
  %v42 = vsel %vm38, 65537, 0
  %v43 = vunpack.c.l.b16 %v39
  %v44 = vunpack.c.l.b16 %v40
  %v45 = vunpack.c.l.b16 %v41
  %v46 = vunpack.c.l.b16 %v42
  %vm47 = vcmp.ne.s32.totalorder %v43, 0
  %vm48 = vcmp.ne.s32.totalorder %v44, 0
  %vm49 = vcmp.ne.s32.totalorder %v45, 0
  %vm50 = vcmp.ne.s32.totalorder %v46, 0
  %v51 = vsel %vm47, 1, 0
  %v52 = vsel %vm48, 1, 0
  %v53 = vsel %vm49, 1, 0
  %v54 = vsel %vm50, 1, 0
  %v55 = vcvt.s32.f32 %v51
  %v56 = vcvt.s32.f32 %v52
  %v57 = vcvt.s32.f32 %v53
  %v58 = vcvt.s32.f32 %v54
  %vm59 = vcmask 518144
  %v60 = vsel %vm59, %v55, 0.0
  %61 = vadd.xlane.f32.xlu0 %v60
  %v62 = vpop.xlane.xlu0 %61
  %v63 = vsel %vm59, %v56, 0.0
  %64 = vadd.xlane.f32.xlu0 %v63
  %v65 = vpop.xlane.xlu0 %64
  %v66 = vsel %vm59, %v57, 0.0
  %67 = vadd.xlane.f32.xlu0 %v66
  %v68 = vpop.xlane.xlu0 %67
  %v69 = vsel %vm59, %v58, 0.0
  %70 = vadd.xlane.f32.xlu0 %v69
  %v71 = vpop.xlane.xlu0 %70
  %v72 = vadd.f32 %v62, 1e-08
  %v73 = vadd.f32 %v65, 1e-08
  %v74 = vadd.f32 %v68, 1e-08
  %v75 = vadd.f32 %v71, 1e-08
  %v76 = vrcp.pop %v72
  %v77 = vrcp.pop %v73
  %v78 = vrcp.pop %v74
  %v79 = vrcp.pop %v75
  %v80 = vmul.f32 %v55, %v76
  %v81 = vmul.f32 %v56, %v77
  %v82 = vmul.f32 %v57, %v78
  %v83 = vmul.f32 %v58, %v79
  %v84 = vpack.c.bf16 %v80, %v80
  %v85 = vpack.c.bf16 %v81, %v81
  %v86 = vpack.c.bf16 %v82, %v82
  %v87 = vpack.c.bf16 %v83, %v83
  %v88 = vld [vmem:[%s0] sm:$0xff]
  %v89 = vld [vmem:[%s0 + $0x8] sm:$0xff]
  %v90 = vld [vmem:[%s0 + $0x10] sm:$0xff]
  %v91 = vld [vmem:[%s0 + $0x18] sm:$0xff]
  %v92 = vld [vmem:[%s0 + $0x20] sm:$0xff]
  %v93 = vld [vmem:[%s0 + $0x28] sm:$0xff]
  %v94 = vld [vmem:[%s0 + $0x30] sm:$0xff]
  %v95 = vld [vmem:[%s0 + $0x38] sm:$0xff]
  %v96 = vld [vmem:[%s0 + $0x40] sm:$0xff]
  %v97 = vld [vmem:[%s0 + $0x48] sm:$0xff]
  %v98 = vld [vmem:[%s0 + $0x50] sm:$0xff]
  %v99 = vld [vmem:[%s0 + $0x58] sm:$0xff]
  %v100 = vld [vmem:[%s0 + $0x60] sm:$0xff]
  %v101 = vld [vmem:[%s0 + $0x68] sm:$0xff]
  %v102 = vld [vmem:[%s0 + $0x70] sm:$0xff]
  %v103 = vld [vmem:[%s0 + $0x78] sm:$0xff]
  %v104 = vld [vmem:[%s0 + $0x80] sm:$0xff]
  %v105 = vld [vmem:[%s0 + $0x88] sm:$0xff]
  %v106 = vld [vmem:[%s0 + $0x90] sm:$0xff]
  %v107 = vld [vmem:[%s0 + $0x98] sm:$0xff]
  %v108 = vld [vmem:[%s0 + $0xa0] sm:$0xff]
  %v109 = vld [vmem:[%s0 + $0xa8] sm:$0xff]
  %v110 = vld [vmem:[%s0 + $0xb0] sm:$0xff]
  %v111 = vld [vmem:[%s0 + $0xb8] sm:$0xff]
  %v112 = vld [vmem:[%s0 + $0xc0] sm:$0xff]
  %v113 = vld [vmem:[%s0 + $0xc8] sm:$0xff]
  %v114 = vld [vmem:[%s0 + $0xd0] sm:$0xff]
  %v115 = vld [vmem:[%s0 + $0xd8] sm:$0xff]
  %v116 = vld [vmem:[%s0 + $0xe0] sm:$0xff]
  %v117 = vld [vmem:[%s0 + $0xe8] sm:$0xff]
  %v118 = vld [vmem:[%s0 + $0xf0] sm:$0xff]
  %v119 = vld [vmem:[%s0 + $0xf8] sm:$0xff]
  %v120 = vpack.c.bf16 %v89, %v88
  %v121 = vpack.c.bf16 %v91, %v90
  %v122 = vpack.c.bf16 %v93, %v92
  %v123 = vpack.c.bf16 %v95, %v94
  %v124 = vpack.c.bf16 %v97, %v96
  %v125 = vpack.c.bf16 %v99, %v98
  %v126 = vpack.c.bf16 %v101, %v100
  %v127 = vpack.c.bf16 %v103, %v102
  %v128 = vpack.c.bf16 %v105, %v104
  %v129 = vpack.c.bf16 %v107, %v106
  %v130 = vpack.c.bf16 %v109, %v108
  %v131 = vpack.c.bf16 %v111, %v110
  %v132 = vpack.c.bf16 %v113, %v112
  %v133 = vpack.c.bf16 %v115, %v114
  %v134 = vpack.c.bf16 %v117, %v116
  %v135 = vpack.c.bf16 %v119, %v118
  %152 = vrot.lane.b32.xlu0 %v120, 32
  %v153 = vpop.permute.xlu0 %152
  %154 = vrot.lane.b32.xlu0 %v121, 32
  %v155 = vpop.permute.xlu0 %154
  %156 = vrot.lane.b32.xlu0 %v122, 32
  %v157 = vpop.permute.xlu0 %156
  %158 = vrot.lane.b32.xlu0 %v123, 32
  %v159 = vpop.permute.xlu0 %158
  %160 = vrot.lane.b32.xlu0 %v124, 32
  %v161 = vpop.permute.xlu0 %160
  %162 = vrot.lane.b32.xlu0 %v125, 32
  %v163 = vpop.permute.xlu0 %162
  %164 = vrot.lane.b32.xlu0 %v126, 32
  %v165 = vpop.permute.xlu0 %164
  %166 = vrot.lane.b32.xlu0 %v127, 32
  %v167 = vpop.permute.xlu0 %166
  %168 = vrot.lane.b32.xlu0 %v128, 32
  %v169 = vpop.permute.xlu0 %168
  %170 = vrot.lane.b32.xlu0 %v129, 32
  %v171 = vpop.permute.xlu0 %170
  %172 = vrot.lane.b32.xlu0 %v130, 32
  %v173 = vpop.permute.xlu0 %172
  %174 = vrot.lane.b32.xlu0 %v131, 32
  %v175 = vpop.permute.xlu0 %174
  %176 = vrot.lane.b32.xlu0 %v132, 32
  %v177 = vpop.permute.xlu0 %176
  %178 = vrot.lane.b32.xlu0 %v133, 32
  %v179 = vpop.permute.xlu0 %178
  %180 = vrot.lane.b32.xlu0 %v134, 32
  %v181 = vpop.permute.xlu0 %180
  %182 = vrot.lane.b32.xlu0 %v135, 32
  %v183 = vpop.permute.xlu0 %182
  %184 = vrot.lane.b32.xlu0 %v120, 64
  %v185 = vpop.permute.xlu0 %184
  %186 = vrot.lane.b32.xlu0 %v121, 64
  %v187 = vpop.permute.xlu0 %186
  %188 = vrot.lane.b32.xlu0 %v122, 64
  %v189 = vpop.permute.xlu0 %188
  %190 = vrot.lane.b32.xlu0 %v123, 64
  %v191 = vpop.permute.xlu0 %190
  %192 = vrot.lane.b32.xlu0 %v124, 64
  %v193 = vpop.permute.xlu0 %192
  %194 = vrot.lane.b32.xlu0 %v125, 64
  %v195 = vpop.permute.xlu0 %194
  %196 = vrot.lane.b32.xlu0 %v126, 64
  %v197 = vpop.permute.xlu0 %196
  %198 = vrot.lane.b32.xlu0 %v127, 64
  %v199 = vpop.permute.xlu0 %198
  %200 = vrot.lane.b32.xlu0 %v128, 64
  %v201 = vpop.permute.xlu0 %200
  %202 = vrot.lane.b32.xlu0 %v129, 64
  %v203 = vpop.permute.xlu0 %202
  %204 = vrot.lane.b32.xlu0 %v130, 64
  %v205 = vpop.permute.xlu0 %204
  %206 = vrot.lane.b32.xlu0 %v131, 64
  %v207 = vpop.permute.xlu0 %206
  %208 = vrot.lane.b32.xlu0 %v132, 64
  %v209 = vpop.permute.xlu0 %208
  %210 = vrot.lane.b32.xlu0 %v133, 64
  %v211 = vpop.permute.xlu0 %210
  %212 = vrot.lane.b32.xlu0 %v134, 64
  %v213 = vpop.permute.xlu0 %212
  %214 = vrot.lane.b32.xlu0 %v135, 64
  %v215 = vpop.permute.xlu0 %214
  %216 = vrot.lane.b32.xlu0 %v120, 96
  %v217 = vpop.permute.xlu0 %216
  %218 = vrot.lane.b32.xlu0 %v121, 96
  %v219 = vpop.permute.xlu0 %218
  %220 = vrot.lane.b32.xlu0 %v122, 96
  %v221 = vpop.permute.xlu0 %220
  %222 = vrot.lane.b32.xlu0 %v123, 96
  %v223 = vpop.permute.xlu0 %222
  %224 = vrot.lane.b32.xlu0 %v124, 96
  %v225 = vpop.permute.xlu0 %224
  %226 = vrot.lane.b32.xlu0 %v125, 96
  %v227 = vpop.permute.xlu0 %226
  %228 = vrot.lane.b32.xlu0 %v126, 96
  %v229 = vpop.permute.xlu0 %228
  %230 = vrot.lane.b32.xlu0 %v127, 96
  %v231 = vpop.permute.xlu0 %230
  %232 = vrot.lane.b32.xlu0 %v128, 96
  %v233 = vpop.permute.xlu0 %232
  %234 = vrot.lane.b32.xlu0 %v129, 96
  %v235 = vpop.permute.xlu0 %234
  %236 = vrot.lane.b32.xlu0 %v130, 96
  %v237 = vpop.permute.xlu0 %236
  %238 = vrot.lane.b32.xlu0 %v131, 96
  %v239 = vpop.permute.xlu0 %238
  %240 = vrot.lane.b32.xlu0 %v132, 96
  %v241 = vpop.permute.xlu0 %240
  %242 = vrot.lane.b32.xlu0 %v133, 96
  %v243 = vpop.permute.xlu0 %242
  %244 = vrot.lane.b32.xlu0 %v134, 96
  %v245 = vpop.permute.xlu0 %244
  %246 = vrot.lane.b32.xlu0 %v135, 96
  %v247 = vpop.permute.xlu0 %246
  %vm248 = vcmask 261120
  %v251 = vsel %vm248, %v120, %v153
  %v254 = vsel %vm248, %v121, %v155
  %v257 = vsel %vm248, %v122, %v157
  %v260 = vsel %vm248, %v123, %v159
  %v263 = vsel %vm248, %v124, %v161
  %v266 = vsel %vm248, %v125, %v163
  %v269 = vsel %vm248, %v126, %v165
  %v272 = vsel %vm248, %v127, %v167
  %v275 = vsel %vm248, %v128, %v169
  %v278 = vsel %vm248, %v129, %v171
  %v281 = vsel %vm248, %v130, %v173
  %v284 = vsel %vm248, %v131, %v175
  %v287 = vsel %vm248, %v132, %v177
  %v290 = vsel %vm248, %v133, %v179
  %v293 = vsel %vm248, %v134, %v181
  %v296 = vsel %vm248, %v135, %v183
  %vm297 = vcmask 523264
  %v299 = vsel %vm297, %v251, %v185
  %v301 = vsel %vm297, %v254, %v187
  %v303 = vsel %vm297, %v257, %v189
  %v305 = vsel %vm297, %v260, %v191
  %v307 = vsel %vm297, %v263, %v193
  %v309 = vsel %vm297, %v266, %v195
  %v311 = vsel %vm297, %v269, %v197
  %v313 = vsel %vm297, %v272, %v199
  %v315 = vsel %vm297, %v275, %v201
  %v317 = vsel %vm297, %v278, %v203
  %v319 = vsel %vm297, %v281, %v205
  %v321 = vsel %vm297, %v284, %v207
  %v323 = vsel %vm297, %v287, %v209
  %v325 = vsel %vm297, %v290, %v211
  %v327 = vsel %vm297, %v293, %v213
  %v329 = vsel %vm297, %v296, %v215
  %vm330 = vcmask 785408
  %v332 = vsel %vm330, %v299, %v217
  %v335 = vsel %vm330, %v301, %v219
  %v338 = vsel %vm330, %v303, %v221
  %v341 = vsel %vm330, %v305, %v223
  %v344 = vsel %vm330, %v307, %v225
  %v347 = vsel %vm330, %v309, %v227
  %v350 = vsel %vm330, %v311, %v229
  %v353 = vsel %vm330, %v313, %v231
  %v356 = vsel %vm330, %v315, %v233
  %v359 = vsel %vm330, %v317, %v235
  %v362 = vsel %vm330, %v319, %v237
  %v365 = vsel %vm330, %v321, %v239
  %v368 = vsel %vm330, %v323, %v241
  %v371 = vsel %vm330, %v325, %v243
  %v374 = vsel %vm330, %v327, %v245
  %v377 = vsel %vm330, %v329, %v247
  %v379 = vld [vmem:[%s2] sm:$0xff]
  %v380 = vld [vmem:[%s2 + $0x8] sm:$0xff]
  %v381 = vld [vmem:[%s2 + $0x10] sm:$0xff]
  %v382 = vld [vmem:[%s2 + $0x18] sm:$0xff]
  %v383 = vld [vmem:[%s2 + $0x20] sm:$0xff]
  %v384 = vld [vmem:[%s2 + $0x28] sm:$0xff]
  %v385 = vld [vmem:[%s2 + $0x30] sm:$0xff]
  %v386 = vld [vmem:[%s2 + $0x38] sm:$0xff]
  %v387 = vld [vmem:[%s2 + $0x40] sm:$0xff]
  %v388 = vld [vmem:[%s2 + $0x48] sm:$0xff]
  %v389 = vld [vmem:[%s2 + $0x50] sm:$0xff]
  %v390 = vld [vmem:[%s2 + $0x58] sm:$0xff]
  %v391 = vld [vmem:[%s2 + $0x60] sm:$0xff]
  %v392 = vld [vmem:[%s2 + $0x68] sm:$0xff]
  %v393 = vld [vmem:[%s2 + $0x70] sm:$0xff]
  %v394 = vld [vmem:[%s2 + $0x78] sm:$0xff]
  %v411 = vunpack.c.l.b16 %v379
  %v412 = vunpack.c.h.b16 %v379
  %v413 = vunpack.c.l.b16 %v380
  %v414 = vunpack.c.h.b16 %v380
  %v415 = vunpack.c.l.b16 %v381
  %v416 = vunpack.c.h.b16 %v381
  %v417 = vunpack.c.l.b16 %v382
  %v418 = vunpack.c.h.b16 %v382
  %v419 = vunpack.c.l.b16 %v383
  %v420 = vunpack.c.h.b16 %v383
  %v421 = vunpack.c.l.b16 %v384
  %v422 = vunpack.c.h.b16 %v384
  %v423 = vunpack.c.l.b16 %v385
  %v424 = vunpack.c.h.b16 %v385
  %v425 = vunpack.c.l.b16 %v386
  %v426 = vunpack.c.h.b16 %v386
  %v427 = vunpack.c.l.b16 %v387
  %v428 = vunpack.c.h.b16 %v387
  %v429 = vunpack.c.l.b16 %v388
  %v430 = vunpack.c.h.b16 %v388
  %v431 = vunpack.c.l.b16 %v389
  %v432 = vunpack.c.h.b16 %v389
  %v433 = vunpack.c.l.b16 %v390
  %v434 = vunpack.c.h.b16 %v390
  %v435 = vunpack.c.l.b16 %v391
  %v436 = vunpack.c.h.b16 %v391
  %v437 = vunpack.c.l.b16 %v392
  %v438 = vunpack.c.h.b16 %v392
  %v439 = vunpack.c.l.b16 %v393
  %v440 = vunpack.c.h.b16 %v393
  %v441 = vunpack.c.l.b16 %v394
  %v442 = vunpack.c.h.b16 %v394
  %v443 = vpack.c.b16 %v415, %v411
  %v444 = vpack.c.b16 %v416, %v412
  %v445 = vpack.c.b16 %v417, %v413
  %v446 = vpack.c.b16 %v418, %v414
  %v447 = vpack.c.b16 %v423, %v419
  %v448 = vpack.c.b16 %v424, %v420
  %v449 = vpack.c.b16 %v425, %v421
  %v450 = vpack.c.b16 %v426, %v422
  %v451 = vpack.c.b16 %v431, %v427
  %v452 = vpack.c.b16 %v432, %v428
  %v453 = vpack.c.b16 %v433, %v429
  %v454 = vpack.c.b16 %v434, %v430
  %v455 = vpack.c.b16 %v439, %v435
  %v456 = vpack.c.b16 %v440, %v436
  %v457 = vpack.c.b16 %v441, %v437
  %v458 = vpack.c.b16 %v442, %v438
  %v475 = vmul.bf16 %v332, %v443
  %v476 = vmul.bf16 %v332, %v444
  %v477 = vmul.bf16 %v332, %v445
  %v478 = vmul.bf16 %v332, %v446
  %v479 = vmul.bf16 %v335, %v447
  %v480 = vmul.bf16 %v335, %v448
  %v481 = vmul.bf16 %v335, %v449
  %v482 = vmul.bf16 %v335, %v450
  %v483 = vmul.bf16 %v338, %v451
  %v484 = vmul.bf16 %v338, %v452
  %v485 = vmul.bf16 %v338, %v453
  %v486 = vmul.bf16 %v338, %v454
  %v487 = vmul.bf16 %v341, %v455
  %v488 = vmul.bf16 %v341, %v456
  %v489 = vmul.bf16 %v341, %v457
  %v490 = vmul.bf16 %v341, %v458
  %v491 = vmul.bf16 %v344, %v443
  %v492 = vmul.bf16 %v344, %v444
  %v493 = vmul.bf16 %v344, %v445
  %v494 = vmul.bf16 %v344, %v446
  %v495 = vmul.bf16 %v347, %v447
  %v496 = vmul.bf16 %v347, %v448
  %v497 = vmul.bf16 %v347, %v449
  %v498 = vmul.bf16 %v347, %v450
  %v499 = vmul.bf16 %v350, %v451
  %v500 = vmul.bf16 %v350, %v452
  %v501 = vmul.bf16 %v350, %v453
  %v502 = vmul.bf16 %v350, %v454
  %v503 = vmul.bf16 %v353, %v455
  %v504 = vmul.bf16 %v353, %v456
  %v505 = vmul.bf16 %v353, %v457
  %v506 = vmul.bf16 %v353, %v458
  %v507 = vmul.bf16 %v356, %v443
  %v508 = vmul.bf16 %v356, %v444
  %v509 = vmul.bf16 %v356, %v445
  %v510 = vmul.bf16 %v356, %v446
  %v511 = vmul.bf16 %v359, %v447
  %v512 = vmul.bf16 %v359, %v448
  %v513 = vmul.bf16 %v359, %v449
  %v514 = vmul.bf16 %v359, %v450
  %v515 = vmul.bf16 %v362, %v451
  %v516 = vmul.bf16 %v362, %v452
  %v517 = vmul.bf16 %v362, %v453
  %v518 = vmul.bf16 %v362, %v454
  %v519 = vmul.bf16 %v365, %v455
  %v520 = vmul.bf16 %v365, %v456
  %v521 = vmul.bf16 %v365, %v457
  %v522 = vmul.bf16 %v365, %v458
  %v523 = vmul.bf16 %v368, %v443
  %v524 = vmul.bf16 %v368, %v444
  %v525 = vmul.bf16 %v368, %v445
  %v526 = vmul.bf16 %v368, %v446
  %v527 = vmul.bf16 %v371, %v447
  %v528 = vmul.bf16 %v371, %v448
  %v529 = vmul.bf16 %v371, %v449
  %v530 = vmul.bf16 %v371, %v450
  %v531 = vmul.bf16 %v374, %v451
  %v532 = vmul.bf16 %v374, %v452
  %v533 = vmul.bf16 %v374, %v453
  %v534 = vmul.bf16 %v374, %v454
  %v535 = vmul.bf16 %v377, %v455
  %v536 = vmul.bf16 %v377, %v456
  %v537 = vmul.bf16 %v377, %v457
  %v538 = vmul.bf16 %v377, %v458
  %v539 = vld [vmem:[%s5] sm:$0xf]
  %v541 = vlaneseq
  %v542 = vshrl.u32 %v541, 7
  %v543 = vsub.s32 0, %v542
  %v544 = vrot.slane %v539, %v543
  %v545 = vlaneseq
  %v546 = vshrl.u32 %v545, 7
  %v547 = vsub.s32 1, %v546
  %v548 = vrot.slane %v539, %v547
  %v549 = vlaneseq
  %v550 = vshrl.u32 %v549, 7
  %v551 = vsub.s32 2, %v550
  %v552 = vrot.slane %v539, %v551
  %v553 = vlaneseq
  %v554 = vshrl.u32 %v553, 7
  %v555 = vsub.s32 3, %v554
  %v556 = vrot.slane %v539, %v555
  %v562 = vsel %vm297, %v84, 0
  %564 = vmatprep.subr.bf16.mxu0 0
  %565 = vmatpush1.bf16.msra.mxu0 0
  %566 = vmatprep.subr.bf16.mxu0 0
  %567 = vmatpush1.bf16.msra.mxu0 0
  %568 = vmatprep.subr.bf16.mxu0 0
  %569 = vmatpush1.bf16.msra.mxu0 0
  %570 = vmatprep.subr.bf16.mxu0 0
  %571 = vmatpush1.bf16.msra.mxu0 0
  %572 = vmatprep.subr.bf16.mxu0 %v488
  %573 = vmatpush1.bf16.msra.mxu0 %v487
  %574 = vmatprep.subr.bf16.mxu0 %v484
  %575 = vmatpush1.bf16.msra.mxu0 %v483
  %576 = vmatprep.subr.bf16.mxu0 %v480
  %577 = vmatpush1.bf16.msra.mxu0 %v479
  %578 = vmatprep.subr.bf16.mxu0 %v476
  %579 = vmatpush1.bf16.msra.mxu0 %v475
  %580 = vmatprep.subr.bf16.mxu0 0
  %581 = vmatpush2.bf16.msra.mxu0 0
  %582 = vmatprep.subr.bf16.mxu0 0
  %583 = vmatpush2.bf16.msra.mxu0 0
  %584 = vmatprep.subr.bf16.mxu0 0
  %585 = vmatpush2.bf16.msra.mxu0 0
  %586 = vmatprep.subr.bf16.mxu0 0
  %587 = vmatpush2.bf16.msra.mxu0 0
  %588 = vmatprep.subr.bf16.mxu0 0
  %589 = vmatpush2.bf16.msra.mxu0 0
  %590 = vmatprep.subr.bf16.mxu0 0
  %591 = vmatpush2.bf16.msra.mxu0 0
  %592 = vmatprep.subr.bf16.mxu0 0
  %593 = vmatpush2.bf16.msra.mxu0 0
  %594 = vmatprep.subr.bf16.mxu0 0
  %595 = vmatpush2.bf16.msra.mxu0 0
  %596 = vmatprep.mubr.bf16.mxu0 0
  %597 = vmatmul.mubr.bf16.gmra.mxu0 %v562
  %v598 = vpop.f32.mrf.mxu0
  %v599 = vadd.f32 %v544, %v598
  %v600 = vpop.f32.mrf.mxu0
  %v601 = vadd.f32 %v548, %v600
  %v602 = vpop.f32.mrf.mxu0
  %v603 = vpop.f32.mrf.mxu0
  %604 = vdwg.mxu0
  %605 = vmatprep.subr.bf16.mxu0 0
  %606 = vmatpush1.bf16.msra.mxu0 0
  %607 = vmatprep.subr.bf16.mxu0 0
  %608 = vmatpush1.bf16.msra.mxu0 0
  %609 = vmatprep.subr.bf16.mxu0 0
  %610 = vmatpush1.bf16.msra.mxu0 0
  %611 = vmatprep.subr.bf16.mxu0 0
  %612 = vmatpush1.bf16.msra.mxu0 0
  %613 = vmatprep.subr.bf16.mxu0 %v490
  %614 = vmatpush1.bf16.msra.mxu0 %v489
  %615 = vmatprep.subr.bf16.mxu0 %v486
  %616 = vmatpush1.bf16.msra.mxu0 %v485
  %617 = vmatprep.subr.bf16.mxu0 %v482
  %618 = vmatpush1.bf16.msra.mxu0 %v481
  %619 = vmatprep.subr.bf16.mxu0 %v478
  %620 = vmatpush1.bf16.msra.mxu0 %v477
  %621 = vmatprep.subr.bf16.mxu0 0
  %622 = vmatpush2.bf16.msra.mxu0 0
  %623 = vmatprep.subr.bf16.mxu0 0
  %624 = vmatpush2.bf16.msra.mxu0 0
  %625 = vmatprep.subr.bf16.mxu0 0
  %626 = vmatpush2.bf16.msra.mxu0 0
  %627 = vmatprep.subr.bf16.mxu0 0
  %628 = vmatpush2.bf16.msra.mxu0 0
  %629 = vmatprep.subr.bf16.mxu0 0
  %630 = vmatpush2.bf16.msra.mxu0 0
  %631 = vmatprep.subr.bf16.mxu0 0
  %632 = vmatpush2.bf16.msra.mxu0 0
  %633 = vmatprep.subr.bf16.mxu0 0
  %634 = vmatpush2.bf16.msra.mxu0 0
  %635 = vmatprep.subr.bf16.mxu0 0
  %636 = vmatpush2.bf16.msra.mxu0 0
  %637 = vmatprep.mubr.bf16.mxu0 0
  %638 = vmatmul.mubr.bf16.gmra.mxu0 %v562
  %v639 = vpop.f32.mrf.mxu0
  %v640 = vadd.f32 %v552, %v639
  %v641 = vpop.f32.mrf.mxu0
  %v642 = vadd.f32 %v556, %v641
  %v643 = vpop.f32.mrf.mxu0
  %v644 = vpop.f32.mrf.mxu0
  %645 = vdwg.mxu0
  %v647 = vsel %vm297, %v85, 0
  %649 = vmatprep.subr.bf16.mxu0 0
  %650 = vmatpush1.bf16.msra.mxu0 0
  %651 = vmatprep.subr.bf16.mxu0 0
  %652 = vmatpush1.bf16.msra.mxu0 0
  %653 = vmatprep.subr.bf16.mxu0 0
  %654 = vmatpush1.bf16.msra.mxu0 0
  %655 = vmatprep.subr.bf16.mxu0 0
  %656 = vmatpush1.bf16.msra.mxu0 0
  %657 = vmatprep.subr.bf16.mxu0 %v504
  %658 = vmatpush1.bf16.msra.mxu0 %v503
  %659 = vmatprep.subr.bf16.mxu0 %v500
  %660 = vmatpush1.bf16.msra.mxu0 %v499
  %661 = vmatprep.subr.bf16.mxu0 %v496
  %662 = vmatpush1.bf16.msra.mxu0 %v495
  %663 = vmatprep.subr.bf16.mxu0 %v492
  %664 = vmatpush1.bf16.msra.mxu0 %v491
  %665 = vmatprep.subr.bf16.mxu0 0
  %666 = vmatpush2.bf16.msra.mxu0 0
  %667 = vmatprep.subr.bf16.mxu0 0
  %668 = vmatpush2.bf16.msra.mxu0 0
  %669 = vmatprep.subr.bf16.mxu0 0
  %670 = vmatpush2.bf16.msra.mxu0 0
  %671 = vmatprep.subr.bf16.mxu0 0
  %672 = vmatpush2.bf16.msra.mxu0 0
  %673 = vmatprep.subr.bf16.mxu0 0
  %674 = vmatpush2.bf16.msra.mxu0 0
  %675 = vmatprep.subr.bf16.mxu0 0
  %676 = vmatpush2.bf16.msra.mxu0 0
  %677 = vmatprep.subr.bf16.mxu0 0
  %678 = vmatpush2.bf16.msra.mxu0 0
  %679 = vmatprep.subr.bf16.mxu0 0
  %680 = vmatpush2.bf16.msra.mxu0 0
  %681 = vmatprep.mubr.bf16.mxu0 0
  %682 = vmatmul.mubr.bf16.gmra.mxu0 %v647
  %v683 = vpop.f32.mrf.mxu0
  %v684 = vadd.f32 %v544, %v683
  %v685 = vpop.f32.mrf.mxu0
  %v686 = vadd.f32 %v548, %v685
  %v687 = vpop.f32.mrf.mxu0
  %v688 = vpop.f32.mrf.mxu0
  %689 = vdwg.mxu0
  %690 = vmatprep.subr.bf16.mxu0 0
  %691 = vmatpush1.bf16.msra.mxu0 0
  %692 = vmatprep.subr.bf16.mxu0 0
  %693 = vmatpush1.bf16.msra.mxu0 0
  %694 = vmatprep.subr.bf16.mxu0 0
  %695 = vmatpush1.bf16.msra.mxu0 0
  %696 = vmatprep.subr.bf16.mxu0 0
  %697 = vmatpush1.bf16.msra.mxu0 0
  %698 = vmatprep.subr.bf16.mxu0 %v506
  %699 = vmatpush1.bf16.msra.mxu0 %v505
  %700 = vmatprep.subr.bf16.mxu0 %v502
  %701 = vmatpush1.bf16.msra.mxu0 %v501
  %702 = vmatprep.subr.bf16.mxu0 %v498
  %703 = vmatpush1.bf16.msra.mxu0 %v497
  %704 = vmatprep.subr.bf16.mxu0 %v494
  %705 = vmatpush1.bf16.msra.mxu0 %v493
  %706 = vmatprep.subr.bf16.mxu0 0
  %707 = vmatpush2.bf16.msra.mxu0 0
  %708 = vmatprep.subr.bf16.mxu0 0
  %709 = vmatpush2.bf16.msra.mxu0 0
  %710 = vmatprep.subr.bf16.mxu0 0
  %711 = vmatpush2.bf16.msra.mxu0 0
  %712 = vmatprep.subr.bf16.mxu0 0
  %713 = vmatpush2.bf16.msra.mxu0 0
  %714 = vmatprep.subr.bf16.mxu0 0
  %715 = vmatpush2.bf16.msra.mxu0 0
  %716 = vmatprep.subr.bf16.mxu0 0
  %717 = vmatpush2.bf16.msra.mxu0 0
  %718 = vmatprep.subr.bf16.mxu0 0
  %719 = vmatpush2.bf16.msra.mxu0 0
  %720 = vmatprep.subr.bf16.mxu0 0
  %721 = vmatpush2.bf16.msra.mxu0 0
  %722 = vmatprep.mubr.bf16.mxu0 0
  %723 = vmatmul.mubr.bf16.gmra.mxu0 %v647
  %v724 = vpop.f32.mrf.mxu0
  %v725 = vadd.f32 %v552, %v724
  %v726 = vpop.f32.mrf.mxu0
  %v727 = vadd.f32 %v556, %v726
  %v728 = vpop.f32.mrf.mxu0
  %v729 = vpop.f32.mrf.mxu0
  %730 = vdwg.mxu0
  %v732 = vsel %vm297, %v86, 0
  %734 = vmatprep.subr.bf16.mxu0 0
  %735 = vmatpush1.bf16.msra.mxu0 0
  %736 = vmatprep.subr.bf16.mxu0 0
  %737 = vmatpush1.bf16.msra.mxu0 0
  %738 = vmatprep.subr.bf16.mxu0 0
  %739 = vmatpush1.bf16.msra.mxu0 0
  %740 = vmatprep.subr.bf16.mxu0 0
  %741 = vmatpush1.bf16.msra.mxu0 0
  %742 = vmatprep.subr.bf16.mxu0 %v520
  %743 = vmatpush1.bf16.msra.mxu0 %v519
  %744 = vmatprep.subr.bf16.mxu0 %v516
  %745 = vmatpush1.bf16.msra.mxu0 %v515
  %746 = vmatprep.subr.bf16.mxu0 %v512
  %747 = vmatpush1.bf16.msra.mxu0 %v511
  %748 = vmatprep.subr.bf16.mxu0 %v508
  %749 = vmatpush1.bf16.msra.mxu0 %v507
  %750 = vmatprep.subr.bf16.mxu0 0
  %751 = vmatpush2.bf16.msra.mxu0 0
  %752 = vmatprep.subr.bf16.mxu0 0
  %753 = vmatpush2.bf16.msra.mxu0 0
  %754 = vmatprep.subr.bf16.mxu0 0
  %755 = vmatpush2.bf16.msra.mxu0 0
  %756 = vmatprep.subr.bf16.mxu0 0
  %757 = vmatpush2.bf16.msra.mxu0 0
  %758 = vmatprep.subr.bf16.mxu0 0
  %759 = vmatpush2.bf16.msra.mxu0 0
  %760 = vmatprep.subr.bf16.mxu0 0
  %761 = vmatpush2.bf16.msra.mxu0 0
  %762 = vmatprep.subr.bf16.mxu0 0
  %763 = vmatpush2.bf16.msra.mxu0 0
  %764 = vmatprep.subr.bf16.mxu0 0
  %765 = vmatpush2.bf16.msra.mxu0 0
  %766 = vmatprep.mubr.bf16.mxu0 0
  %767 = vmatmul.mubr.bf16.gmra.mxu0 %v732
  %v768 = vpop.f32.mrf.mxu0
  %v769 = vadd.f32 %v544, %v768
  %v770 = vpop.f32.mrf.mxu0
  %v771 = vadd.f32 %v548, %v770
  %v772 = vpop.f32.mrf.mxu0
  %v773 = vpop.f32.mrf.mxu0
  %774 = vdwg.mxu0
  %775 = vmatprep.subr.bf16.mxu0 0
  %776 = vmatpush1.bf16.msra.mxu0 0
  %777 = vmatprep.subr.bf16.mxu0 0
  %778 = vmatpush1.bf16.msra.mxu0 0
  %779 = vmatprep.subr.bf16.mxu0 0
  %780 = vmatpush1.bf16.msra.mxu0 0
  %781 = vmatprep.subr.bf16.mxu0 0
  %782 = vmatpush1.bf16.msra.mxu0 0
  %783 = vmatprep.subr.bf16.mxu0 %v522
  %784 = vmatpush1.bf16.msra.mxu0 %v521
  %785 = vmatprep.subr.bf16.mxu0 %v518
  %786 = vmatpush1.bf16.msra.mxu0 %v517
  %787 = vmatprep.subr.bf16.mxu0 %v514
  %788 = vmatpush1.bf16.msra.mxu0 %v513
  %789 = vmatprep.subr.bf16.mxu0 %v510
  %790 = vmatpush1.bf16.msra.mxu0 %v509
  %791 = vmatprep.subr.bf16.mxu0 0
  %792 = vmatpush2.bf16.msra.mxu0 0
  %793 = vmatprep.subr.bf16.mxu0 0
  %794 = vmatpush2.bf16.msra.mxu0 0
  %795 = vmatprep.subr.bf16.mxu0 0
  %796 = vmatpush2.bf16.msra.mxu0 0
  %797 = vmatprep.subr.bf16.mxu0 0
  %798 = vmatpush2.bf16.msra.mxu0 0
  %799 = vmatprep.subr.bf16.mxu0 0
  %800 = vmatpush2.bf16.msra.mxu0 0
  %801 = vmatprep.subr.bf16.mxu0 0
  %802 = vmatpush2.bf16.msra.mxu0 0
  %803 = vmatprep.subr.bf16.mxu0 0
  %804 = vmatpush2.bf16.msra.mxu0 0
  %805 = vmatprep.subr.bf16.mxu0 0
  %806 = vmatpush2.bf16.msra.mxu0 0
  %807 = vmatprep.mubr.bf16.mxu0 0
  %808 = vmatmul.mubr.bf16.gmra.mxu0 %v732
  %v809 = vpop.f32.mrf.mxu0
  %v810 = vadd.f32 %v552, %v809
  %v811 = vpop.f32.mrf.mxu0
  %v812 = vadd.f32 %v556, %v811
  %v813 = vpop.f32.mrf.mxu0
  %v814 = vpop.f32.mrf.mxu0
  %815 = vdwg.mxu0
  %v817 = vsel %vm297, %v87, 0
  %819 = vmatprep.subr.bf16.mxu0 0
  %820 = vmatpush1.bf16.msra.mxu0 0
  %821 = vmatprep.subr.bf16.mxu0 0
  %822 = vmatpush1.bf16.msra.mxu0 0
  %823 = vmatprep.subr.bf16.mxu0 0
  %824 = vmatpush1.bf16.msra.mxu0 0
  %825 = vmatprep.subr.bf16.mxu0 0
  %826 = vmatpush1.bf16.msra.mxu0 0
  %827 = vmatprep.subr.bf16.mxu0 %v536
  %828 = vmatpush1.bf16.msra.mxu0 %v535
  %829 = vmatprep.subr.bf16.mxu0 %v532
  %830 = vmatpush1.bf16.msra.mxu0 %v531
  %831 = vmatprep.subr.bf16.mxu0 %v528
  %832 = vmatpush1.bf16.msra.mxu0 %v527
  %833 = vmatprep.subr.bf16.mxu0 %v524
  %834 = vmatpush1.bf16.msra.mxu0 %v523
  %835 = vmatprep.subr.bf16.mxu0 0
  %836 = vmatpush2.bf16.msra.mxu0 0
  %837 = vmatprep.subr.bf16.mxu0 0
  %838 = vmatpush2.bf16.msra.mxu0 0
  %839 = vmatprep.subr.bf16.mxu0 0
  %840 = vmatpush2.bf16.msra.mxu0 0
  %841 = vmatprep.subr.bf16.mxu0 0
  %842 = vmatpush2.bf16.msra.mxu0 0
  %843 = vmatprep.subr.bf16.mxu0 0
  %844 = vmatpush2.bf16.msra.mxu0 0
  %845 = vmatprep.subr.bf16.mxu0 0
  %846 = vmatpush2.bf16.msra.mxu0 0
  %847 = vmatprep.subr.bf16.mxu0 0
  %848 = vmatpush2.bf16.msra.mxu0 0
  %849 = vmatprep.subr.bf16.mxu0 0
  %850 = vmatpush2.bf16.msra.mxu0 0
  %851 = vmatprep.mubr.bf16.mxu0 0
  %852 = vmatmul.mubr.bf16.gmra.mxu0 %v817
  %v853 = vpop.f32.mrf.mxu0
  %v854 = vadd.f32 %v544, %v853
  %v855 = vpop.f32.mrf.mxu0
  %v856 = vadd.f32 %v548, %v855
  %v857 = vpop.f32.mrf.mxu0
  %v858 = vpop.f32.mrf.mxu0
  %859 = vdwg.mxu0
  %860 = vmatprep.subr.bf16.mxu0 0
  %861 = vmatpush1.bf16.msra.mxu0 0
  %862 = vmatprep.subr.bf16.mxu0 0
  %863 = vmatpush1.bf16.msra.mxu0 0
  %864 = vmatprep.subr.bf16.mxu0 0
  %865 = vmatpush1.bf16.msra.mxu0 0
  %866 = vmatprep.subr.bf16.mxu0 0
  %867 = vmatpush1.bf16.msra.mxu0 0
  %868 = vmatprep.subr.bf16.mxu0 %v538
  %869 = vmatpush1.bf16.msra.mxu0 %v537
  %870 = vmatprep.subr.bf16.mxu0 %v534
  %871 = vmatpush1.bf16.msra.mxu0 %v533
  %872 = vmatprep.subr.bf16.mxu0 %v530
  %873 = vmatpush1.bf16.msra.mxu0 %v529
  %874 = vmatprep.subr.bf16.mxu0 %v526
  %875 = vmatpush1.bf16.msra.mxu0 %v525
  %876 = vmatprep.subr.bf16.mxu0 0
  %877 = vmatpush2.bf16.msra.mxu0 0
  %878 = vmatprep.subr.bf16.mxu0 0
  %879 = vmatpush2.bf16.msra.mxu0 0
  %880 = vmatprep.subr.bf16.mxu0 0
  %881 = vmatpush2.bf16.msra.mxu0 0
  %882 = vmatprep.subr.bf16.mxu0 0
  %883 = vmatpush2.bf16.msra.mxu0 0
  %884 = vmatprep.subr.bf16.mxu0 0
  %885 = vmatpush2.bf16.msra.mxu0 0
  %886 = vmatprep.subr.bf16.mxu0 0
  %887 = vmatpush2.bf16.msra.mxu0 0
  %888 = vmatprep.subr.bf16.mxu0 0
  %889 = vmatpush2.bf16.msra.mxu0 0
  %890 = vmatprep.subr.bf16.mxu0 0
  %891 = vmatpush2.bf16.msra.mxu0 0
  %892 = vmatprep.mubr.bf16.mxu0 0
  %893 = vmatmul.mubr.bf16.gmra.mxu0 %v817
  %v894 = vpop.f32.mrf.mxu0
  %v895 = vadd.f32 %v552, %v894
  %v896 = vpop.f32.mrf.mxu0
  %v897 = vadd.f32 %v556, %v896
  %v898 = vpop.f32.mrf.mxu0
  %v899 = vpop.f32.mrf.mxu0
  %900 = vdwg.mxu0
  %v917 = vcombine.low %v599, %v601
  %v918 = vcombine.low %v640, %v642
  %v919 = vcombine.low %v684, %v686
  %v920 = vcombine.low %v725, %v727
  %v921 = vcombine.low %v769, %v771
  %v922 = vcombine.low %v810, %v812
  %v923 = vcombine.low %v854, %v856
  %v924 = vcombine.low %v895, %v897
  %933 = vst [vmem:[%s7] sm:$0x77] %v917
  %934 = vst [vmem:[%s7 + $0x8] sm:$0x77] %v918
  %935 = vst [vmem:[%s7 + $0x10] sm:$0x77] %v919
  %936 = vst [vmem:[%s7 + $0x18] sm:$0x77] %v920
  %937 = vst [vmem:[%s7 + $0x20] sm:$0x77] %v921
  %938 = vst [vmem:[%s7 + $0x28] sm:$0x77] %v922
  %939 = vst [vmem:[%s7 + $0x30] sm:$0x77] %v923
  %940 = vst [vmem:[%s7 + $0x38] sm:$0x77] %v924
  %v941 = vsub.f32 %v72, 1e-08
  %v942 = vsub.f32 %v73, 1e-08
  %v943 = vsub.f32 %v74, 1e-08
  %v944 = vsub.f32 %v75, 1e-08
  %v945 = vmul.f32 %v76, 0.015625
  %v946 = vmul.f32 %v77, 0.015625
  %v947 = vmul.f32 %v78, 0.015625
  %v948 = vmul.f32 %v79, 0.015625
  %v949 = vmul.f32 %v941, %v945
  %v950 = vmul.f32 %v942, %v946
  %v951 = vmul.f32 %v943, %v947
  %v952 = vmul.f32 %v944, %v948
  %v953 = vld [vmem:[%s3] sm:$0x1]
  %v955 = vlaneseq
  %v956 = vshrl.u32 %v955, 7
  %v957 = vsub.s32 0, %v956
  %v958 = vrot.slane %v953, %v957
  %v960 = vmul.f32 %v949, %v958
  %v961 = vmul.f32 %v950, %v958
  %v962 = vmul.f32 %v951, %v958
  %v963 = vmul.f32 %v952, %v958
  %v964 = vld [vmem:[%s4] sm:$0x1]
  %v966 = vlaneseq
  %v967 = vshrl.u32 %v966, 7
  %v968 = vsub.s32 0, %v967
  %v969 = vrot.slane %v964, %v968
  %v971 = vadd.f32 %v960, %v969
  %v972 = vadd.f32 %v961, %v969
  %v973 = vadd.f32 %v962, %v969
  %v974 = vadd.f32 %v963, %v969
  %v975 = vld [vmem:[%s6] sm:$0x1]
  %v977 = vlaneseq
  %v978 = vshrl.u32 %v977, 7
  %v979 = vsub.s32 0, %v978
  %v980 = vrot.slane %v975, %v979
  %v982 = vadd.f32 %v971, %v980
  %v983 = vadd.f32 %v972, %v980
  %v984 = vadd.f32 %v973, %v980
  %v985 = vadd.f32 %v974, %v980
  %vm986 = vcmask 256000
  %987 = vst.msk [vmem:[%s8] sm:$0x7] %vm986, %v982
  %988 = vst.msk [vmem:[%s8 + $0x4] sm:$0x7] %vm986, %v983
  %989 = vst.msk [vmem:[%s8 + $0x8] sm:$0x7] %vm986, %v984
  %990 = vst.msk [vmem:[%s8 + $0xc] sm:$0x7] %vm986, %v985
  // Predicated region
  $region30: #{tpu_custom_call.1} parent=0 // pred_check
    _
  $region31: #{tpu_custom_call.1} parent=0 // pred_check_branch
    %992 = sbr.rel (0) target = $region33
  $region32: #{tpu_custom_call.1} parent=0 // pred_region
    _
  $region33: #{tpu_custom_call.1} parent=0 // pred_fallthru
    _
  // Predicated region
  $region34: #{tpu_custom_call.1} parent=0 // pred_check
    _
  $region35: #{tpu_custom_call.1} parent=0 // pred_check_branch
    %994 = sbr.rel (0) target = $region37
  $region36: #{tpu_custom_call.1} parent=0 // pred_region
    _
  $region37: #{tpu_custom_call.1} parent=0 // pred_fallthru
    _
  // Predicated region
  $region38: #{tpu_custom_call.1} parent=0 // pred_check
    _
  $region39: #{tpu_custom_call.1} parent=0 // pred_check_branch
    %996 = sbr.rel (0) target = $region41
  $region40: #{tpu_custom_call.1} parent=0 // pred_region
    _
  $region41: #{tpu_custom_call.1} parent=0 // pred_fallthru
    _
  // Predicated region
  $region42: #{tpu_custom_call.1} parent=0 // pred_check
    _
  $region43: #{tpu_custom_call.1} parent=0 // pred_check_branch
    %998 = sbr.rel (0) target = $region45
  $region44: #{tpu_custom_call.1} parent=0 // pred_region
    _
  $region45: #{tpu_custom_call.1} parent=0 // pred_fallthru
    _

</llo_original>
